<compile_context>
chip_gen: v7x
topology: tpu7x:2x2x1
jax: 0.10.0
libtpu: 0.0.40
codegen_flags: <defaults>
</compile_context>

<pallas_src>
import functools

import jax
import jax.numpy as jnp
from jax.experimental import pallas as pl
from jax.experimental.pallas import tpu as pltpu

LN_EPS = 1e-5  # nn.LayerNorm default


def _round_up(v, m):
    return ((v + m - 1) // m) * m


def _pick_col_tile(d, cap):
    """Largest multiple-of-128 divisor of d that is <= cap (else full d)."""
    if d <= cap or d % 128 != 0:
        return d
    t = (cap // 128) * 128
    while t >= 128:
        if d % t == 0:
            return t
        t -= 128
    return d


def _res_norm_linear_kernel(x_ref, xres_ref, g_ref, be_ref, w_ref, b_ref,
                            o_ref, *, inv_d):
    # x_ref:    (TM, D)   full-hidden row tile (for LayerNorm statistics)
    # xres_ref: (TM, TN)  same rows, current column slab (for the residual)
    # w_ref:    (D, TN)   W^T column slab (bf16), resident across token sweep
    x = x_ref[...].astype(jnp.float32)

    # --- LayerNorm over the full hidden dim (sum * 1/D; rsqrt -> EUP) ---
    mean = jnp.sum(x, axis=-1, keepdims=True) * inv_d
    xc = x - mean
    var = jnp.sum(xc * xc, axis=-1, keepdims=True) * inv_d
    inv = jax.lax.rsqrt(var + LN_EPS)
    normed = (xc * inv) * g_ref[...].astype(jnp.float32) \
        + be_ref[...].astype(jnp.float32)

    # --- wrapped layer: Linear(dim, dim), bf16 operands on the MXU, f32 acc ---
    y = jnp.dot(normed.astype(w_ref.dtype), w_ref[...],
                preferred_element_type=jnp.float32)          # (TM, TN)
    y = y + b_ref[...].astype(jnp.float32)

    # --- dropout (eval mode: identity) + residual ---
    o_ref[...] = (xres_ref[...].astype(jnp.float32) + y).astype(o_ref.dtype)


def residual_norm_linear(x, gamma, beta, w_t, b, *, tm=512, tn=2048):
    """input + Linear(LayerNorm(input)), Pallas TPU kernel.

    x: (T, D) tokens-by-hidden; gamma/beta/b: (1, D); w_t: (D, D) = W^T
    (pre-transposed, ideally bf16).  tm/tn are token / output-column tiles.
    """
    T, D = x.shape
    assert w_t.shape == (D, D)
    gamma = gamma.reshape(1, D)
    beta = beta.reshape(1, D)
    b = b.reshape(1, D)

    # Token tile: multiple of 8 (f32 sublane), capped by the (padded) row count.
    tm = max(8, min(_round_up(tm, 8), _round_up(T, 8)))
    t_pad = _round_up(T, tm)
    x_p = jnp.pad(x, ((0, t_pad - T), (0, 0))) if t_pad != T else x

    # Output-column tile: lane-dense divisor of D (keeps W slab small on v7x).
    tn_c = _pick_col_tile(D, tn)
    n_tok = t_pad // tm
    n_col = D // tn_c

    xd = jnp.dtype(x.dtype).itemsize
    wd = jnp.dtype(w_t.dtype).itemsize

    # Rough scoped-VMEM need: double-buffered slabs + f32 intermediates.
    vmem_est = (2 * D * tn_c * wd            # W^T column slab
                + 2 * tm * D * xd            # x (full hidden) tiles
                + 2 * tm * tn_c * xd         # residual tiles
                + 2 * tm * tn_c * xd         # output tiles
                + 4 * tm * D * 4             # f32 intermediates headroom
                + 8 * D * 4)
    vmem_limit = int(min(max(32 * 1024 * 1024, 2 * vmem_est),
                         128 * 1024 * 1024))

    cost = pl.CostEstimate(
        flops=2 * t_pad * D * D,
        transcendentals=t_pad * n_col,
        bytes_accessed=int(n_col * t_pad * D * xd      # x re-read per col tile
                           + t_pad * D * xd            # residual view
                           + D * D * wd                # weight (once per col)
                           + t_pad * D * xd),          # output
    )

    out = pl.pallas_call(
        functools.partial(_res_norm_linear_kernel, inv_d=1.0 / D),
        out_shape=jax.ShapeDtypeStruct((t_pad, D), x.dtype),
        grid_spec=pltpu.PrefetchScalarGridSpec(
            num_scalar_prefetch=0,
            # (column tiles, token tiles): token axis innermost so the W slab
            # block index is constant across it -> weight DMA'd once per column.
            grid=(n_col, n_tok),
            in_specs=[
                pl.BlockSpec((tm, D), lambda j, i: (i, 0)),      # x (full D, for LN)
                pl.BlockSpec((tm, tn_c), lambda j, i: (i, j)),   # x residual slab
                pl.BlockSpec((1, D), lambda j, i: (0, 0)),       # gamma (resident)
                pl.BlockSpec((1, D), lambda j, i: (0, 0)),       # beta  (resident)
                pl.BlockSpec((D, tn_c), lambda j, i: (0, j)),    # W^T column slab
                pl.BlockSpec((1, tn_c), lambda j, i: (0, j)),    # bias slab
            ],
            out_specs=pl.BlockSpec((tm, tn_c), lambda j, i: (i, j)),
        ),
        compiler_params=pltpu.CompilerParams(
            dimension_semantics=("parallel", "parallel"),
            vmem_limit_bytes=vmem_limit,
        ),
        cost_estimate=cost,
    )(x_p, x_p, gamma, beta, w_t, b)

    return out[:T] if t_pad != T else out


def reference(x, gamma, beta, w_t, b):
    """Pure-JAX reference with the same mixed precision as the kernel."""
    xf = x.astype(jnp.float32)
    mean = jnp.mean(xf, axis=-1, keepdims=True)
    var = jnp.mean((xf - mean) ** 2, axis=-1, keepdims=True)
    normed = (xf - mean) * jax.lax.rsqrt(var + LN_EPS) * gamma + beta
    y = jnp.dot(normed.astype(w_t.dtype), w_t,
                preferred_element_type=jnp.float32)
    y = y + b.astype(jnp.float32)
    return (xf + y).astype(x.dtype)


if __name__ == "__main__":
    # Small but lane-dense shapes: hidden is a multiple of 128 so the MXU and
    # the output stores run unmasked (per perf review).
    batch, seq, dim = 2, 8, 256
    key = jax.random.PRNGKey(0)
    k_x, k_w, k_b, k_g, k_be = jax.random.split(key, 5)

    x = jax.random.normal(k_x, (batch, seq, dim), dtype=jnp.float32)

    # Deterministic synthetic parameters (no checkpoint load).
    gamma = (jnp.ones((1, dim), jnp.float32)
             + 0.01 * jax.random.normal(k_g, (1, dim), jnp.float32))
    beta = 0.01 * jax.random.normal(k_be, (1, dim), jnp.float32)
    # Linear(dim, dim): store W^T (dim_in, dim_out), bf16 for MXU-native matmul.
    w_t = (jax.random.normal(k_w, (dim, dim), jnp.float32)
           / jnp.sqrt(dim)).astype(jnp.bfloat16)
    b = 0.01 * jax.random.normal(k_b, (1, dim), jnp.float32)

    x2d = x.reshape(batch * seq, dim)                 # (tokens, dim)
    # Small tiles so the tiny test exercises the full (column, token) grid.
    out2d = residual_norm_linear(x2d, gamma, beta, w_t, b, tm=8, tn=128)
    out = out2d.reshape(batch, seq, dim)
    jax.block_until_ready(out)

    ref = reference(x2d, gamma, beta, w_t, b).reshape(batch, seq, dim)
    assert jnp.allclose(out, ref, atol=2e-2, rtol=2e-2), "mismatch vs reference"

    print("KERNEL_OK")
</pallas_src>

<mosaic_0001>
module attributes {stable_mosaic.version = 11 : i64} {
  func.func @_res_norm_linear_kernel(%arg0: i32, %arg1: i32, %arg2: memref<8x256xf32, #tpu.memory_space<vmem>>, %arg3: memref<8x128xf32, #tpu.memory_space<vmem>>, %arg4: memref<1x256xf32, #tpu.memory_space<vmem>>, %arg5: memref<1x256xf32, #tpu.memory_space<vmem>>, %arg6: memref<256x128xbf16, #tpu.memory_space<vmem>>, %arg7: memref<1x128xf32, #tpu.memory_space<vmem>>, %arg8: memref<8x128xf32, #tpu.memory_space<vmem>>) attributes {dimension_semantics = [#tpu.dimension_semantics<parallel>, #tpu.dimension_semantics<parallel>], iteration_bounds = array<i64: 2, 2>, scalar_prefetch = 0 : i64, scratch_operands = 0 : i64, tpu.core_type = #tpu.core_type<tc>, window_params = [{transform_indices = @transform_0, window_bounds = array<i64: 8, 256>}, {transform_indices = @transform_1, window_bounds = array<i64: 8, 128>}, {pipeline_mode = #tpu.pipeline_mode<synchronous>, transform_indices = @transform_2, window_bounds = array<i64: 1, 256>}, {pipeline_mode = #tpu.pipeline_mode<synchronous>, transform_indices = @transform_3, window_bounds = array<i64: 1, 256>}, {transform_indices = @transform_4, window_bounds = array<i64: 256, 128>}, {transform_indices = @transform_5, window_bounds = array<i64: 1, 128>}, {transform_indices = @transform_6, window_bounds = array<i64: 8, 128>}]} {
    %c0 = arith.constant 0 : index
    %c0_0 = arith.constant 0 : index
    %0 = vector.load %arg2[%c0, %c0_0] : memref<8x256xf32, #tpu.memory_space<vmem>>, vector<8x256xf32>
    %cst = arith.constant dense<0.000000e+00> : vector<8xf32>
    %1 = vector.multi_reduction <add>, %0, %cst [1] : vector<8x256xf32> to vector<8xf32>
    %2 = vector.shape_cast %1 : vector<8xf32> to vector<8x1xf32>
    %cst_1 = arith.constant 3.906250e-03 : f32
    %3 = vector.broadcast %cst_1 : f32 to vector<8x1xf32>
    %4 = arith.mulf %2, %3 : vector<8x1xf32>
    %5 = vector.broadcast %4 : vector<8x1xf32> to vector<8x256xf32>
    %6 = arith.subf %0, %5 : vector<8x256xf32>
    %7 = arith.mulf %6, %6 : vector<8x256xf32>
    %cst_2 = arith.constant dense<0.000000e+00> : vector<8xf32>
    %8 = vector.multi_reduction <add>, %7, %cst_2 [1] : vector<8x256xf32> to vector<8xf32>
    %9 = vector.shape_cast %8 : vector<8xf32> to vector<8x1xf32>
    %cst_3 = arith.constant 3.906250e-03 : f32
    %10 = vector.broadcast %cst_3 : f32 to vector<8x1xf32>
    %11 = arith.mulf %9, %10 : vector<8x1xf32>
    %cst_4 = arith.constant 9.99999974E-6 : f32
    %12 = vector.broadcast %cst_4 : f32 to vector<8x1xf32>
    %13 = arith.addf %11, %12 : vector<8x1xf32>
    %14 = math.rsqrt %13 : vector<8x1xf32>
    %15 = vector.broadcast %14 : vector<8x1xf32> to vector<8x256xf32>
    %16 = arith.mulf %6, %15 : vector<8x256xf32>
    %c0_5 = arith.constant 0 : index
    %c0_6 = arith.constant 0 : index
    %17 = vector.load %arg4[%c0_5, %c0_6] : memref<1x256xf32, #tpu.memory_space<vmem>>, vector<1x256xf32>
    %18 = vector.broadcast %17 : vector<1x256xf32> to vector<8x256xf32>
    %19 = arith.mulf %16, %18 : vector<8x256xf32>
    %c0_7 = arith.constant 0 : index
    %c0_8 = arith.constant 0 : index
    %20 = vector.load %arg5[%c0_7, %c0_8] : memref<1x256xf32, #tpu.memory_space<vmem>>, vector<1x256xf32>
    %21 = vector.broadcast %20 : vector<1x256xf32> to vector<8x256xf32>
    %22 = arith.addf %19, %21 : vector<8x256xf32>
    %23 = arith.truncf %22 : vector<8x256xf32> to vector<8x256xbf16>
    %c0_9 = arith.constant 0 : index
    %c0_10 = arith.constant 0 : index
    %24 = vector.load %arg6[%c0_9, %c0_10] : memref<256x128xbf16, #tpu.memory_space<vmem>>, vector<256x128xbf16>
    %cst_11 = arith.constant dense<0.000000e+00> : vector<8x128xf32>
    %25 = tpu.matmul %23, %24, %cst_11 {dimension_numbers = #tpu.dot_dimension_numbers<[1], [0], [0], [1], [0, 0, 1, 1], [], []>} : vector<8x256xbf16>, vector<256x128xbf16>, vector<8x128xf32> -> vector<8x128xf32>
    %c0_12 = arith.constant 0 : index
    %c0_13 = arith.constant 0 : index
    %26 = vector.load %arg7[%c0_12, %c0_13] : memref<1x128xf32, #tpu.memory_space<vmem>>, vector<1x128xf32>
    %27 = vector.broadcast %26 : vector<1x128xf32> to vector<8x128xf32>
    %28 = arith.addf %25, %27 : vector<8x128xf32>
    %c0_14 = arith.constant 0 : index
    %c0_15 = arith.constant 0 : index
    %29 = vector.load %arg3[%c0_14, %c0_15] : memref<8x128xf32, #tpu.memory_space<vmem>>, vector<8x128xf32>
    %30 = arith.addf %29, %28 : vector<8x128xf32>
    %c0_16 = arith.constant 0 : index
    %c0_17 = arith.constant 0 : index
    %31 = vector.load %arg8[%c0_16, %c0_17] : memref<8x128xf32, #tpu.memory_space<vmem>>, vector<8x128xf32>
    tpu.vector_store %arg8[%c0_16, %c0_17], %30 {strides = array<i32>} : memref<8x128xf32, #tpu.memory_space<vmem>>, vector<8x128xf32>,
    return
  }
  func.func @transform_0(%arg0: i32, %arg1: i32) -> (i32, i32) {
    %c0_i32 = arith.constant 0 : i32
    %c0_i32_0 = arith.constant 0 : i32
    return %arg1, %c0_i32 : i32, i32
  }
  func.func @transform_1(%arg0: i32, %arg1: i32) -> (i32, i32) {
    %c0_i32 = arith.constant 0 : i32
    return %arg1, %arg0 : i32, i32
  }
  func.func @transform_2(%arg0: i32, %arg1: i32) -> (i32, i32) {
    %c0_i32 = arith.constant 0 : i32
    %c0_i32_0 = arith.constant 0 : i32
    %c0_i32_1 = arith.constant 0 : i32
    return %c0_i32, %c0_i32_0 : i32, i32
  }
  func.func @transform_3(%arg0: i32, %arg1: i32) -> (i32, i32) {
    %c0_i32 = arith.constant 0 : i32
    %c0_i32_0 = arith.constant 0 : i32
    %c0_i32_1 = arith.constant 0 : i32
    return %c0_i32, %c0_i32_0 : i32, i32
  }
  func.func @transform_4(%arg0: i32, %arg1: i32) -> (i32, i32) {
    %c0_i32 = arith.constant 0 : i32
    %c0_i32_0 = arith.constant 0 : i32
    return %c0_i32, %arg0 : i32, i32
  }
  func.func @transform_5(%arg0: i32, %arg1: i32) -> (i32, i32) {
    %c0_i32 = arith.constant 0 : i32
    %c0_i32_0 = arith.constant 0 : i32
    return %c0_i32, %arg0 : i32, i32
  }
  func.func @transform_6(%arg0: i32, %arg1: i32) -> (i32, i32) {
    %c0_i32 = arith.constant 0 : i32
    return %arg1, %arg0 : i32, i32
  }
}

</mosaic_0001>

<llo_original>
// kernel: tpu_custom_call.1
$region0: #{tpu_custom_call.1}
  #allocation0 [shape = 'u32[]', space=smem, size = 0x4, offset = 0x4, fixed_abs, tag = 'smem constant byte address 0x4 - core index']
  #allocation1 [shape = 'u32[144,128]{1,0:T(1,128)}', space=vmem, size = 0x12000, scoped, tag = 'internal scratch']
  %s0 = inlined_call_operand.hbm [shape: f32[16,256], index: 0, kind: input, shape index: {}]
  %s1 = inlined_call_operand.hbm [shape: f32[16,256], index: 1, kind: input, shape index: {}]
  %s2 = inlined_call_operand.vmem [shape: f32[1,256], index: 2, kind: input, shape index: {}]
  %s3 = inlined_call_operand.vmem [shape: f32[1,256], index: 3, kind: input, shape index: {}]
  %s4 = inlined_call_operand.hbm [shape: bf16[256,256], index: 4, kind: input, shape index: {}]
  %s5 = inlined_call_operand.vmem [shape: f32[1,256], index: 5, kind: input, shape index: {}]
  %s6 = inlined_call_operand.hbm [shape: f32[16,256], index: 6, kind: output, shape index: {}]
  %s7 = sld [smem:[#allocation0]]
  $region69: #{tpu_custom_call.1} parent=0
    _
  %s9 = ssub.s32 1, %s7
  %s10 = scalar_select 0, %s9, %s7
  $region1: #{tpu_custom_call.1} parent=0
    #allocation2 [shape = 'u8[16384]{0}', space=vmem, size = 0x4000, scoped, tag = 'input window, operand 0']
    #allocation3 [shape = 's32[2]{0}', space=sflag, size = 0x8, scoped, tag = 'scoped memory for tpu_custom_call.1']
    #allocation4 [shape = 's32[2]{0}', space=sflag, size = 0x8, scoped, tag = 'scoped memory for tpu_custom_call.1']
    #allocation5 [shape = 'u8[8192]{0}', space=vmem, size = 0x2000, scoped, tag = 'input window, operand 1']
    #allocation6 [shape = 's32[2]{0}', space=sflag, size = 0x8, scoped, tag = 'scoped memory for tpu_custom_call.1']
    #allocation7 [shape = 'u8[131072]{0}', space=vmem, size = 0x20000, scoped, tag = 'input window, operand 4']
    #allocation8 [shape = 'u8[8192]{0}', space=vmem, size = 0x2000, scoped, tag = 'output window, operand 0']
    %11 = vsyncpa [#allocation3], 0
    %s12 = scalar_lea.sflag [#allocation3], 1
    %13 = vsyncpa %s12, 0
    %14 = vsyncpa [#allocation6], 0
    %s15 = scalar_lea.sflag [#allocation6], 1
    %16 = vsyncpa %s15, 0
    %17 = vsyncpa [#allocation4], 0
    %s18 = scalar_lea.sflag [#allocation4], 1
    %19 = vsyncpa %s18, 0
    loop: start=0, step=1, limit=6
    $region2: #{tpu_custom_call.1} parent=1 // loop_pre_header
      _
    $region3: #{tpu_custom_call.1} parent=1 // loop_header
      %s21 = sphi 0, %s25
      %p22 = scmp.ge.s32.totalorder %s21, 6
      %s28 = sphi 0, %s40
      %s29 = sphi 0, %s36
      %s30 = sphi 0, %s28
      %s31 = sphi 0, %s29
      %s32 = sphi 0, %s30
      %s33 = sphi 0, %s31
      %s43 = sphi 0, %s45
      %s46 = sphi 0, %s43
      %s47 = sphi 0, %s46
      %s63 = sphi 0, %s47
      %s71 = sphi 0, %s73
      %s74 = sphi 0, %s71
      %s75 = sphi 0, %s74
      %s91 = sphi 0, %s75
      %s95 = sphi 0, %s95
      %s97 = sphi 0, %s95
      %s98 = sphi 0, %s97
      %s112 = sphi 0, %s98
      %s116 = sphi 0, %s116
      %s118 = sphi 0, %s116
      %s119 = sphi 0, %s118
      %s133 = sphi 0, %s119
      %s139 = sphi 0, %s141
      %s142 = sphi 0, %s139
      %s143 = sphi 0, %s142
      %s159 = sphi 0, %s143
      %s165 = sphi 0, %s167
      %s168 = sphi 0, %s165
      %s169 = sphi 0, %s168
      %s185 = sphi 0, %s169
      %s193 = sphi 0, %s195
      %s196 = sphi 0, %s193
      %s197 = sphi 0, %s196
      %s213 = sphi 0, %s197
    $region4: #{tpu_custom_call.1} parent=1 // loop_header_branch
      %24 = sbr.rel (%p22) target = $region8
    $region5: #{tpu_custom_call.1} parent=1 // loop_body
      %s26 = ssub.s32 %s21, 1
      %s27 = ssub.s32 %s21, 2
      %s34 = sadd.s32 1, %s29
      %p35 = scmp.ge.s32.totalorder %s34, 2
      %s36 = scalar_select %p35, 0, %s34
      %s37 = sadd.s32 1, %s28
      %s38 = scalar_select %p35, %s37, %s28
      %p39 = scmp.ge.s32.totalorder %s38, 2
      %s40 = scalar_select %p39, 0, %s38
      %s41 = ssub.s32 %s29, %s36
      %p42 = scmp.eq.s32.totalorder %s41, 0
      %s44 = sadd.s32 %s43, 1
      %s45 = scalar_select %p42, %s43, %s44
      %p48 = pneg %p42
      %p49 = scmp.eq.s32.totalorder %s21, 3
      %p50 = por %p48, %p49
      %p51 = scmp.ne.s32.totalorder %s43, %s46
      %p52 = scmp.eq.s32.totalorder %s21, 0
      %p53 = por %p51, %p52
      %p54 = scmp.ne.s32.totalorder %s43, %s46
      %p55 = scmp.eq.s32.totalorder %s26, 3
      %p56 = por %p54, %p55
      %p57 = scmp.ne.s32.totalorder %s46, %s47
      %p58 = scmp.eq.s32.totalorder %s26, 0
      %p59 = por %p57, %p58
      %p60 = scmp.ne.s32.totalorder %s46, %s47
      %p61 = scmp.eq.s32.totalorder %s27, 3
      %p62 = por %p60, %p61
      %p64 = scmp.ne.s32.totalorder %s47, %s63
      %p65 = scmp.eq.s32.totalorder %s27, 0
      %p66 = por %p64, %p65
      %s67 = ssub.s32 %s29, %s36
      %s68 = ssub.s32 %s28, %s40
      %s69 = sor.u32 %s67, %s68
      %p70 = scmp.eq.s32.totalorder %s69, 0
      %s72 = sadd.s32 %s71, 1
      %s73 = scalar_select %p70, %s71, %s72
      %p76 = pneg %p70
      %p77 = scmp.eq.s32.totalorder %s21, 3
      %p78 = por %p76, %p77
      %p79 = scmp.ne.s32.totalorder %s71, %s74
      %p80 = scmp.eq.s32.totalorder %s21, 0
      %p81 = por %p79, %p80
      %p82 = scmp.ne.s32.totalorder %s71, %s74
      %p83 = scmp.eq.s32.totalorder %s26, 3
      %p84 = por %p82, %p83
      %p85 = scmp.ne.s32.totalorder %s74, %s75
      %p86 = scmp.eq.s32.totalorder %s26, 0
      %p87 = por %p85, %p86
      %p88 = scmp.ne.s32.totalorder %s74, %s75
      %p89 = scmp.eq.s32.totalorder %s27, 3
      %p90 = por %p88, %p89
      %p92 = scmp.ne.s32.totalorder %s75, %s91
      %p93 = scmp.eq.s32.totalorder %s27, 0
      %p94 = por %p92, %p93
      %s96 = sadd.s32 %s95, 1
      %p99 = scmp.eq.s32.totalorder %s21, 3
      %p100 = scmp.ne.s32.totalorder %s95, %s97
      %p101 = scmp.eq.s32.totalorder %s21, 0
      %p102 = por %p100, %p101
      %p103 = scmp.ne.s32.totalorder %s95, %s97
      %p104 = scmp.eq.s32.totalorder %s26, 3
      %p105 = por %p103, %p104
      %p106 = scmp.ne.s32.totalorder %s97, %s98
      %p107 = scmp.eq.s32.totalorder %s26, 0
      %p108 = por %p106, %p107
      %p109 = scmp.ne.s32.totalorder %s97, %s98
      %p110 = scmp.eq.s32.totalorder %s27, 3
      %p111 = por %p109, %p110
      %p113 = scmp.ne.s32.totalorder %s98, %s112
      %p114 = scmp.eq.s32.totalorder %s27, 0
      %p115 = por %p113, %p114
      %s117 = sadd.s32 %s116, 1
      %p120 = scmp.eq.s32.totalorder %s21, 3
      %p121 = scmp.ne.s32.totalorder %s116, %s118
      %p122 = scmp.eq.s32.totalorder %s21, 0
      %p123 = por %p121, %p122
      %p124 = scmp.ne.s32.totalorder %s116, %s118
      %p125 = scmp.eq.s32.totalorder %s26, 3
      %p126 = por %p124, %p125
      %p127 = scmp.ne.s32.totalorder %s118, %s119
      %p128 = scmp.eq.s32.totalorder %s26, 0
      %p129 = por %p127, %p128
      %p130 = scmp.ne.s32.totalorder %s118, %s119
      %p131 = scmp.eq.s32.totalorder %s27, 3
      %p132 = por %p130, %p131
      %p134 = scmp.ne.s32.totalorder %s119, %s133
      %p135 = scmp.eq.s32.totalorder %s27, 0
      %p136 = por %p134, %p135
      %s137 = ssub.s32 %s28, %s40
      %p138 = scmp.eq.s32.totalorder %s137, 0
      %s140 = sadd.s32 %s139, 1
      %s141 = scalar_select %p138, %s139, %s140
      %p144 = pneg %p138
      %p145 = scmp.eq.s32.totalorder %s21, 3
      %p146 = por %p144, %p145
      %p147 = scmp.ne.s32.totalorder %s139, %s142
      %p148 = scmp.eq.s32.totalorder %s21, 0
      %p149 = por %p147, %p148
      %p150 = scmp.ne.s32.totalorder %s139, %s142
      %p151 = scmp.eq.s32.totalorder %s26, 3
      %p152 = por %p150, %p151
      %p153 = scmp.ne.s32.totalorder %s142, %s143
      %p154 = scmp.eq.s32.totalorder %s26, 0
      %p155 = por %p153, %p154
      %p156 = scmp.ne.s32.totalorder %s142, %s143
      %p157 = scmp.eq.s32.totalorder %s27, 3
      %p158 = por %p156, %p157
      %p160 = scmp.ne.s32.totalorder %s143, %s159
      %p161 = scmp.eq.s32.totalorder %s27, 0
      %p162 = por %p160, %p161
      %s163 = ssub.s32 %s28, %s40
      %p164 = scmp.eq.s32.totalorder %s163, 0
      %s166 = sadd.s32 %s165, 1
      %s167 = scalar_select %p164, %s165, %s166
      %p170 = pneg %p164
      %p171 = scmp.eq.s32.totalorder %s21, 3
      %p172 = por %p170, %p171
      %p173 = scmp.ne.s32.totalorder %s165, %s168
      %p174 = scmp.eq.s32.totalorder %s21, 0
      %p175 = por %p173, %p174
      %p176 = scmp.ne.s32.totalorder %s165, %s168
      %p177 = scmp.eq.s32.totalorder %s26, 3
      %p178 = por %p176, %p177
      %p179 = scmp.ne.s32.totalorder %s168, %s169
      %p180 = scmp.eq.s32.totalorder %s26, 0
      %p181 = por %p179, %p180
      %p182 = scmp.ne.s32.totalorder %s168, %s169
      %p183 = scmp.eq.s32.totalorder %s27, 3
      %p184 = por %p182, %p183
      %p186 = scmp.ne.s32.totalorder %s169, %s185
      %p187 = scmp.eq.s32.totalorder %s27, 0
      %p188 = por %p186, %p187
      %s189 = ssub.s32 %s29, %s36
      %s190 = ssub.s32 %s28, %s40
      %s191 = sor.u32 %s189, %s190
      %p192 = scmp.eq.s32.totalorder %s191, 0
      %s194 = sadd.s32 %s193, 1
      %s195 = scalar_select %p192, %s193, %s194
      %p198 = pneg %p192
      %p199 = scmp.eq.s32.totalorder %s21, 3
      %p200 = por %p198, %p199
      %p201 = scmp.ne.s32.totalorder %s193, %s196
      %p202 = scmp.eq.s32.totalorder %s21, 0
      %p203 = por %p201, %p202
      %p204 = scmp.ne.s32.totalorder %s193, %s196
      %p205 = scmp.eq.s32.totalorder %s26, 3
      %p206 = por %p204, %p205
      %p207 = scmp.ne.s32.totalorder %s196, %s197
      %p208 = scmp.eq.s32.totalorder %s26, 0
      %p209 = por %p207, %p208
      %p210 = scmp.ne.s32.totalorder %s196, %s197
      %p211 = scmp.eq.s32.totalorder %s27, 3
      %p212 = por %p210, %p211
      %p214 = scmp.ne.s32.totalorder %s197, %s213
      %p215 = scmp.eq.s32.totalorder %s27, 0
      %p216 = por %p214, %p215
      %p217 = scmp.le.s32.totalorder 1, %s21
      %p218 = scmp.lt.s32.totalorder %s21, 5
      %p219 = pnand %p217, %p218
      %p220 = pneg %p219
      // Predicated region
      $region9: #{tpu_custom_call.1} parent=5 // pred_check
        _
      $region10: #{tpu_custom_call.1} parent=5 // pred_check_branch
        %222 = sbr.rel (%p219) target = $region12
      $region11: #{tpu_custom_call.1} parent=5 // pred_region
        %s223 = ssub.s32 %s21, 1
        // Predicated region
        $region13: #{tpu_custom_call.1} parent=11 // pred_check
          %p224 = pneg %p108
        $region14: #{tpu_custom_call.1} parent=11 // pred_check_branch
          %226 = sbr.rel (%p224) target = $region16
        $region15: #{tpu_custom_call.1} parent=11 // pred_region
          _
        $region16: #{tpu_custom_call.1} parent=11 // pred_fallthru
          _
        // Predicated region
        $region17: #{tpu_custom_call.1} parent=11 // pred_check
          %p227 = pneg %p129
        $region18: #{tpu_custom_call.1} parent=11 // pred_check_branch
          %229 = sbr.rel (%p227) target = $region20
        $region19: #{tpu_custom_call.1} parent=11 // pred_region
          _
        $region20: #{tpu_custom_call.1} parent=11 // pred_fallthru
          _
      $region12: #{tpu_custom_call.1} parent=5 // pred_fallthru
        _
      %p230 = scmp.lt.s32.totalorder %s21, 4
      // Predicated region
      $region21: #{tpu_custom_call.1} parent=5 // pred_check
        %p231 = pneg %p230
      $region22: #{tpu_custom_call.1} parent=5 // pred_check_branch
        %233 = sbr.rel (%p231) target = $region24
      $region23: #{tpu_custom_call.1} parent=5 // pred_region
        // Predicated region
        $region25: #{tpu_custom_call.1} parent=23 // pred_check
          %p234 = pneg %p53
        $region26: #{tpu_custom_call.1} parent=23 // pred_check_branch
          %236 = sbr.rel (%p234) target = $region28
        $region27: #{tpu_custom_call.1} parent=23 // pred_region
          %s237 = sand.u32 %s43, 1
          %s238 = scalar_lea.sflag [#allocation3], %s237
          %s239 = sand.u32 %s43, 1
          %s240 = smul.addr %s239, 16
          %s241 = scalar_lea.vmem [#allocation2], %s240
          %s243 = ssub.s32 256, 256
          %244 = vsyncadd %s238, %s243
          %s245 = smul.addr %s29, 2
          %s246 = smul.addr %s245, 128
          %s247 = scalar_lea.hbm %s0, %s246
          %s249 = sshll.u32 %s241, 4
          %s250 = int_to_ptr.vmem [resolvable:$true] %s249
          %252 = dma.hbm_to_vmem [thread:$0]  %s247, 256, %s250, %s238
        $region28: #{tpu_custom_call.1} parent=23 // pred_fallthru
          _
        // Predicated region
        $region29: #{tpu_custom_call.1} parent=23 // pred_check
          %p253 = pneg %p81
        $region30: #{tpu_custom_call.1} parent=23 // pred_check_branch
          %255 = sbr.rel (%p253) target = $region32
        $region31: #{tpu_custom_call.1} parent=23 // pred_region
          %s256 = sand.u32 %s21, 1
          %s257 = scalar_lea.sflag [#allocation6], %s256
          %s258 = sand.u32 %s71, 1
          %s259 = smul.addr %s258, 8
          %s260 = scalar_lea.vmem [#allocation5], %s259
          %s262 = ssub.s32 128, 128
          %263 = vsyncadd %s257, %s262
          %s264 = smul.addr %s29, 2
          %s265 = sadd.s32 %s28, %s264
          %s266 = smul.addr %s265, 128
          %s267 = scalar_lea.hbm %s1, %s266
          %s269 = sshll.u32 %s260, 4
          %s270 = int_to_ptr.vmem [resolvable:$true] %s269
          %272 = dma.hbm_to_vmem [thread:$0]  %s267, 128, %s270, %s257
        $region32: #{tpu_custom_call.1} parent=23 // pred_fallthru
          _
        // Predicated region
        $region33: #{tpu_custom_call.1} parent=23 // pred_check
          %p273 = pneg %p149
        $region34: #{tpu_custom_call.1} parent=23 // pred_check_branch
          %275 = sbr.rel (%p273) target = $region36
        $region35: #{tpu_custom_call.1} parent=23 // pred_region
          %s276 = sand.u32 %s21, 1
          %s277 = scalar_lea.sflag [#allocation6], %s276
          %s278 = sand.u32 %s139, 1
          %s279 = smul.addr %s278, 128
          %s280 = scalar_lea.vmem [#allocation7], %s279
          %s282 = ssub.s32 2048, 2048
          %283 = vsyncadd %s277, %s282
          %s284 = smul.addr %s28, 64
          %s285 = scalar_lea.hbm %s4, %s284
          %s286 = sshll.u32 %s280, 4
          %s287 = int_to_ptr.vmem [resolvable:$true] %s286
          %292 = dma.hbm_to_vmem [thread:$0]  %s285, 2048, %s287, %s277, 128, 64, 4
        $region36: #{tpu_custom_call.1} parent=23 // pred_fallthru
          _
        // Predicated region
        $region37: #{tpu_custom_call.1} parent=23 // pred_check
          %p293 = pneg %p175
        $region38: #{tpu_custom_call.1} parent=23 // pred_check_branch
          %295 = sbr.rel (%p293) target = $region40
        $region39: #{tpu_custom_call.1} parent=23 // pred_region
          %p296 = scmp.lt.s32.totalorder %s28, 1
          %s297 = scalar_select %p296, %s28, 1
          %s298 = scalar_lea.vmem %s5, %s297
        $region40: #{tpu_custom_call.1} parent=23 // pred_fallthru
          _
      $region24: #{tpu_custom_call.1} parent=5 // pred_fallthru
        _
      %p299 = scmp.le.s32.totalorder 1, %s21
      %p300 = scmp.lt.s32.totalorder %s21, 5
      %p301 = pnand %p299, %p300
      %p302 = pneg %p301
      // Predicated region
      $region41: #{tpu_custom_call.1} parent=5 // pred_check
        _
      $region42: #{tpu_custom_call.1} parent=5 // pred_check_branch
        %304 = sbr.rel (%p301) target = $region44
      $region43: #{tpu_custom_call.1} parent=5 // pred_region
        %s305 = ssub.s32 %s21, 1
        %s306 = sand.u32 %s46, 1
        %s307 = scalar_lea.sflag [#allocation3], %s306
        %s308 = sand.u32 %s46, 1
        %s309 = smul.addr %s308, 16
        %s310 = scalar_lea.vmem [#allocation2], %s309
        // Predicated region
        $region45: #{tpu_custom_call.1} parent=43 // pred_check
          %p311 = pneg %p59
        $region46: #{tpu_custom_call.1} parent=43 // pred_check_branch
          %313 = sbr.rel (%p311) target = $region48
        $region47: #{tpu_custom_call.1} parent=43 // pred_region
          %314 = dma.done %s307, 256
        $region48: #{tpu_custom_call.1} parent=43 // pred_fallthru
          _
        %s315 = sand.u32 %s26, 1
        %s316 = scalar_lea.sflag [#allocation6], %s315
        %s317 = sand.u32 %s74, 1
        %s318 = smul.addr %s317, 8
        %s319 = scalar_lea.vmem [#allocation5], %s318
        // Predicated region
        $region49: #{tpu_custom_call.1} parent=43 // pred_check
          %p320 = pneg %p87
        $region50: #{tpu_custom_call.1} parent=43 // pred_check_branch
          %322 = sbr.rel (%p320) target = $region52
        $region51: #{tpu_custom_call.1} parent=43 // pred_region
          %323 = dma.done %s316, 128
        $region52: #{tpu_custom_call.1} parent=43 // pred_fallthru
          _
        %s324 = sand.u32 %s26, 1
        %s325 = scalar_lea.sflag [#allocation6], %s324
        %s326 = sand.u32 %s142, 1
        %s327 = smul.addr %s326, 128
        %s328 = scalar_lea.vmem [#allocation7], %s327
        // Predicated region
        $region53: #{tpu_custom_call.1} parent=43 // pred_check
          %p329 = pneg %p155
        $region54: #{tpu_custom_call.1} parent=43 // pred_check_branch
          %331 = sbr.rel (%p329) target = $region56
        $region55: #{tpu_custom_call.1} parent=43 // pred_region
          %332 = dma.done %s325, 2048
        $region56: #{tpu_custom_call.1} parent=43 // pred_fallthru
          _
        %s333 = sand.u32 %s46, 1
        %s334 = scalar_lea.sflag [#allocation3], %s333
        %s335 = sand.u32 %s46, 1
        %s336 = smul.addr %s335, 16
        %s337 = scalar_lea.vmem [#allocation2], %s336
        %p338 = pneg %p59
        %p339 = pneg %p56
        %s340 = sand.u32 %s26, 1
        %s341 = scalar_lea.sflag [#allocation6], %s340
        %s342 = sand.u32 %s74, 1
        %s343 = smul.addr %s342, 8
        %s344 = scalar_lea.vmem [#allocation5], %s343
        %p345 = pneg %p87
        %p346 = pneg %p84
        %p347 = pneg %p108
        %p348 = pneg %p105
        %p349 = pneg %p129
        %p350 = pneg %p126
        %s351 = sand.u32 %s26, 1
        %s352 = scalar_lea.sflag [#allocation6], %s351
        %s353 = sand.u32 %s142, 1
        %s354 = smul.addr %s353, 128
        %s355 = scalar_lea.vmem [#allocation7], %s354
        %p356 = pneg %p155
        %p357 = pneg %p152
        %p358 = scmp.lt.s32.totalorder %s30, 1
        %s359 = scalar_select %p358, %s30, 1
        %s360 = scalar_lea.vmem %s5, %s359
        %p361 = pneg %p181
        %p362 = pneg %p178
        %p363 = pneg %p209
        %p364 = pneg %p206
        %s365 = sand.u32 %s196, 1
        %s366 = scalar_lea.sflag [#allocation4], %s365
        %s367 = sand.u32 %s196, 1
        %s368 = smul.addr %s367, 8
        %s369 = scalar_lea.vmem [#allocation8], %s368
        %p370 = scmp.lt.s32.totalorder %s30, 1
        %s371 = scalar_select %p370, %s30, 1
        %s372 = scalar_lea.vmem %s5, %s371
        %v374 = vld [vmem:[%s310] sm:$0xff]
        %v375 = vld [vmem:[%s310 + $0x8] sm:$0xff]
        %v376 = vadd.f32 %v374, %v375
        %377 = vadd.xlane.f32.xlu0 %v376
        %v378 = vpop.xlane.xlu0 %377
        %v379 = vmul.f32 %v378, 0.00390625
        %v380 = vsub.f32 %v374, %v379
        %v381 = vsub.f32 %v375, %v379
        %v382 = vmul.f32 %v380, %v380
        %v383 = vmul.f32 %v381, %v381
        %v384 = vadd.f32 %v382, %v383
        %385 = vadd.xlane.f32.xlu0 %v384
        %v386 = vpop.xlane.xlu0 %385
        %v387 = vmul.f32 %v386, 0.00390625
        %v388 = vadd.f32 %v387, 1e-05
        %v389 = vrsqrt.pop %v388
        %v390 = vmul.f32 %v380, %v389
        %v391 = vmul.f32 %v381, %v389
        %v392 = vld [vmem:[%s2] sm:$0x3]
        %v394 = vlaneseq
        %v395 = vshrl.u32 %v394, 7
        %v396 = vsub.s32 0, %v395
        %v397 = vrot.slane %v392, %v396
        %v398 = vlaneseq
        %v399 = vshrl.u32 %v398, 7
        %v400 = vsub.s32 1, %v399
        %v401 = vrot.slane %v392, %v400
        %v404 = vmul.f32 %v390, %v397
        %v405 = vmul.f32 %v391, %v401
        %v406 = vld [vmem:[%s3] sm:$0x3]
        %v408 = vlaneseq
        %v409 = vshrl.u32 %v408, 7
        %v410 = vsub.s32 0, %v409
        %v411 = vrot.slane %v406, %v410
        %v412 = vlaneseq
        %v413 = vshrl.u32 %v412, 7
        %v414 = vsub.s32 1, %v413
        %v415 = vrot.slane %v406, %v414
        %v418 = vadd.f32 %v404, %v411
        %v419 = vadd.f32 %v405, %v415
        %v420 = vpack.c.bf16 %v418, %v418
        %v421 = vpack.c.bf16 %v419, %v419
        %v422 = vld [vmem:[%s328] sm:$0xf]
        %v423 = vld [vmem:[%s328 + $0x4] sm:$0xf]
        %v424 = vld [vmem:[%s328 + $0x8] sm:$0xf]
        %v425 = vld [vmem:[%s328 + $0xc] sm:$0xf]
        %v426 = vld [vmem:[%s328 + $0x10] sm:$0xf]
        %v427 = vld [vmem:[%s328 + $0x14] sm:$0xf]
        %v428 = vld [vmem:[%s328 + $0x18] sm:$0xf]
        %v429 = vld [vmem:[%s328 + $0x1c] sm:$0xf]
        %v430 = vld [vmem:[%s328 + $0x20] sm:$0xf]
        %v431 = vld [vmem:[%s328 + $0x24] sm:$0xf]
        %v432 = vld [vmem:[%s328 + $0x28] sm:$0xf]
        %v433 = vld [vmem:[%s328 + $0x2c] sm:$0xf]
        %v434 = vld [vmem:[%s328 + $0x30] sm:$0xf]
        %v435 = vld [vmem:[%s328 + $0x34] sm:$0xf]
        %v436 = vld [vmem:[%s328 + $0x38] sm:$0xf]
        %v437 = vld [vmem:[%s328 + $0x3c] sm:$0xf]
        %v438 = vld [vmem:[%s328 + $0x40] sm:$0xf]
        %v439 = vld [vmem:[%s328 + $0x44] sm:$0xf]
        %v440 = vld [vmem:[%s328 + $0x48] sm:$0xf]
        %v441 = vld [vmem:[%s328 + $0x4c] sm:$0xf]
        %v442 = vld [vmem:[%s328 + $0x50] sm:$0xf]
        %v443 = vld [vmem:[%s328 + $0x54] sm:$0xf]
        %v444 = vld [vmem:[%s328 + $0x58] sm:$0xf]
        %v445 = vld [vmem:[%s328 + $0x5c] sm:$0xf]
        %v446 = vld [vmem:[%s328 + $0x60] sm:$0xf]
        %v447 = vld [vmem:[%s328 + $0x64] sm:$0xf]
        %v448 = vld [vmem:[%s328 + $0x68] sm:$0xf]
        %v449 = vld [vmem:[%s328 + $0x6c] sm:$0xf]
        %v450 = vld [vmem:[%s328 + $0x70] sm:$0xf]
        %v451 = vld [vmem:[%s328 + $0x74] sm:$0xf]
        %v452 = vld [vmem:[%s328 + $0x78] sm:$0xf]
        %v453 = vld [vmem:[%s328 + $0x7c] sm:$0xf]
        %v454 = vld [vmem:[%s372] sm:$0x1]
        %v456 = vlaneseq
        %v457 = vshrl.u32 %v456, 7
        %v458 = vsub.s32 0, %v457
        %v459 = vrot.slane %v454, %v458
        %v493 = vunpack.c.l.b16 %v422
        %v494 = vunpack.c.l.b16 %v423
        %v495 = vunpack.c.l.b16 %v424
        %v496 = vunpack.c.l.b16 %v425
        %v497 = vunpack.c.l.b16 %v426
        %v498 = vunpack.c.l.b16 %v427
        %v499 = vunpack.c.l.b16 %v428
        %v500 = vunpack.c.l.b16 %v429
        %v501 = vunpack.c.l.b16 %v430
        %v502 = vunpack.c.l.b16 %v431
        %v503 = vunpack.c.l.b16 %v432
        %v504 = vunpack.c.l.b16 %v433
        %v505 = vunpack.c.l.b16 %v434
        %v506 = vunpack.c.l.b16 %v435
        %v507 = vunpack.c.l.b16 %v436
        %v508 = vunpack.c.l.b16 %v437
        %v509 = vunpack.c.l.b16 %v438
        %v510 = vunpack.c.l.b16 %v439
        %v511 = vunpack.c.l.b16 %v440
        %v512 = vunpack.c.l.b16 %v441
        %v513 = vunpack.c.l.b16 %v442
        %v514 = vunpack.c.l.b16 %v443
        %v515 = vunpack.c.l.b16 %v444
        %v516 = vunpack.c.l.b16 %v445
        %v517 = vunpack.c.l.b16 %v446
        %v518 = vunpack.c.l.b16 %v447
        %v519 = vunpack.c.l.b16 %v448
        %v520 = vunpack.c.l.b16 %v449
        %v521 = vunpack.c.l.b16 %v450
        %v522 = vunpack.c.l.b16 %v451
        %v523 = vunpack.c.l.b16 %v452
        %v524 = vunpack.c.l.b16 %v453
        %v525 = vpack.c.b16 %v494, %v493
        %v526 = vpack.c.b16 %v496, %v495
        %v527 = vpack.c.b16 %v498, %v497
        %v528 = vpack.c.b16 %v500, %v499
        %v529 = vpack.c.b16 %v502, %v501
        %v530 = vpack.c.b16 %v504, %v503
        %v531 = vpack.c.b16 %v506, %v505
        %v532 = vpack.c.b16 %v508, %v507
        %v533 = vpack.c.b16 %v510, %v509
        %v534 = vpack.c.b16 %v512, %v511
        %v535 = vpack.c.b16 %v514, %v513
        %v536 = vpack.c.b16 %v516, %v515
        %v537 = vpack.c.b16 %v518, %v517
        %v538 = vpack.c.b16 %v520, %v519
        %v539 = vpack.c.b16 %v522, %v521
        %v540 = vpack.c.b16 %v524, %v523
        %557 = vmatprep.subr.bf16.mxu0 0
        %558 = vmatpush1.bf16.msra.mxu0 %v525
        %559 = vmatprep.subr.bf16.mxu0 0
        %560 = vmatpush1.bf16.msra.mxu0 %v526
        %561 = vmatprep.subr.bf16.mxu0 0
        %562 = vmatpush1.bf16.msra.mxu0 %v527
        %563 = vmatprep.subr.bf16.mxu0 0
        %564 = vmatpush1.bf16.msra.mxu0 %v528
        %565 = vmatprep.subr.bf16.mxu0 0
        %566 = vmatpush1.bf16.msra.mxu0 %v529
        %567 = vmatprep.subr.bf16.mxu0 0
        %568 = vmatpush1.bf16.msra.mxu0 %v530
        %569 = vmatprep.subr.bf16.mxu0 0
        %570 = vmatpush1.bf16.msra.mxu0 %v531
        %571 = vmatprep.subr.bf16.mxu0 0
        %572 = vmatpush1.bf16.msra.mxu0 %v532
        %573 = vmatprep.subr.bf16.mxu0 0
        %574 = vmatpush1.bf16.msra.mxu0 %v533
        %575 = vmatprep.subr.bf16.mxu0 0
        %576 = vmatpush1.bf16.msra.mxu0 %v534
        %577 = vmatprep.subr.bf16.mxu0 0
        %578 = vmatpush1.bf16.msra.mxu0 %v535
        %579 = vmatprep.subr.bf16.mxu0 0
        %580 = vmatpush1.bf16.msra.mxu0 %v536
        %581 = vmatprep.subr.bf16.mxu0 0
        %582 = vmatpush1.bf16.msra.mxu0 %v537
        %583 = vmatprep.subr.bf16.mxu0 0
        %584 = vmatpush1.bf16.msra.mxu0 %v538
        %585 = vmatprep.subr.bf16.mxu0 0
        %586 = vmatpush1.bf16.msra.mxu0 %v539
        %587 = vmatprep.subr.bf16.mxu0 0
        %588 = vmatpush1.bf16.msra.mxu0 %v540
        %589 = vmatprep.mubr.bf16.mxu0 %v421
        %590 = vmatmul.mubr.bf16.gmra.mrb[0].mxu0 %v420
        %v591 = vpop.f32.mrb[0].mxu0
        %v592 = vadd.f32 %v459, %v591
        %v593 = vpop.f32.mrb[0].mxu0
        %v594 = vpop.f32.mrb[0].mxu0
        %v595 = vpop.f32.mrb[0].mxu0
        %596 = vdwg.mxu0
        %v597 = vld [vmem:[%s319] sm:$0xff]
        %v598 = vadd.f32 %v597, %v592
        %599 = vst [vmem:[%s369] sm:$0xff] %v598
        %s600 = sand.u32 %s196, 1
        %s601 = scalar_lea.sflag [#allocation4], %s600
        %s602 = sand.u32 %s196, 1
        %s603 = smul.addr %s602, 8
        %s604 = scalar_lea.vmem [#allocation8], %s603
        // Predicated region
        $region57: #{tpu_custom_call.1} parent=43 // pred_check
          %p605 = pneg %p206
        $region58: #{tpu_custom_call.1} parent=43 // pred_check_branch
          %607 = sbr.rel (%p605) target = $region60
        $region59: #{tpu_custom_call.1} parent=43 // pred_region
          %s609 = ssub.s32 128, 128
          %610 = vsyncadd %s601, %s609
          %s611 = smul.addr %s31, 2
          %s612 = sadd.s32 %s30, %s611
          %s613 = smul.addr %s612, 128
          %s614 = scalar_lea.hbm %s6, %s613
          %s616 = sshll.u32 %s604, 4
          %s617 = int_to_ptr.vmem [resolvable:$true] %s616
          %619 = dma.vmem_to_hbm [thread:$0]  %s617, 128, %s614, %s601
        $region60: #{tpu_custom_call.1} parent=43 // pred_fallthru
          _
      $region44: #{tpu_custom_call.1} parent=5 // pred_fallthru
        _
      %p620 = scmp.le.s32.totalorder 2, %s21
      // Predicated region
      $region61: #{tpu_custom_call.1} parent=5 // pred_check
        %p621 = pneg %p620
      $region62: #{tpu_custom_call.1} parent=5 // pred_check_branch
        %623 = sbr.rel (%p621) target = $region64
      $region63: #{tpu_custom_call.1} parent=5 // pred_region
        %s624 = ssub.s32 %s21, 2
        // Predicated region
        $region65: #{tpu_custom_call.1} parent=63 // pred_check
          %p625 = pneg %p212
        $region66: #{tpu_custom_call.1} parent=63 // pred_check_branch
          %627 = sbr.rel (%p625) target = $region68
        $region67: #{tpu_custom_call.1} parent=63 // pred_region
          %s628 = sand.u32 %s197, 1
          %s629 = scalar_lea.sflag [#allocation4], %s628
          %s630 = sand.u32 %s197, 1
          %s631 = smul.addr %s630, 8
          %s632 = scalar_lea.vmem [#allocation8], %s631
          %633 = dma.done %s629, 128
        $region68: #{tpu_custom_call.1} parent=63 // pred_fallthru
          _
      $region64: #{tpu_custom_call.1} parent=5 // pred_fallthru
        _
    $region6: #{tpu_custom_call.1} parent=1 // loop_footer
      %s25 = sadd.s32 1, %s21
    $region7: #{tpu_custom_call.1} parent=1 // loop_footer_branch
      %20 = sbr.rel target = $region3
    $region8: #{tpu_custom_call.1} parent=1 // loop_exit
      _
    %634 = vsyncpa [#allocation3], 1
    %s635 = scalar_lea.sflag [#allocation3], 1
    %636 = vsyncpa %s635, 1
    %637 = vsyncpa [#allocation6], 1
    %s638 = scalar_lea.sflag [#allocation6], 1
    %639 = vsyncpa %s638, 1
    %640 = vsyncpa [#allocation4], 1
    %s641 = scalar_lea.sflag [#allocation4], 1
    %642 = vsyncpa %s641, 1

</llo_original>
